<compile_context>
chip_gen: v5e
topology: v5e:2x2
jax: 0.10.0
libtpu: 0.0.40
codegen_flags: <defaults>
</compile_context>

<pallas_src>
import jax
import jax.numpy as jnp
from jax import lax
from jax.experimental import pallas as pl

INF = 1e20

# Small deterministic sizes consistent with the module.
B = 2      # batch
TQ = 8     # query tokens
M = 8      # memory slots
F = 4      # in-memory feature fields per slot
FO = 4     # out-memory feature fields per slot
E = 32     # embedding size (query_embed_size == in_memory_embed_size)

RMEM = B * F * M     # 64 rows of the feature-major in-memory matrix
BTQ = B * TQ         # 16 query rows / score columns


# ---------------------------------------------------------------------------
# Fused kernel: single invocation, both batches handled inside.
# ---------------------------------------------------------------------------
def _romhop_kernel(q_ref, memin_ref, memout_ref, aux_ref, out_ref):
    q = q_ref[...]                       # (16, 32)  rows = (b, q)
    memin = memin_ref[...]               # (64, 32)  rows = (b, f, m)
    memout = memout_ref[...]             # (64, 32)  rows = (b, f, m)
    aux = aux_ref[...]                   # (80, 16)
    keep = aux[0:RMEM, :]                # (64, 16)  combined 0/1 mask
    qatt = aux[RMEM:RMEM + BTQ, 0:1]     # (16, 1)   query_att, rows = (b, q)

    # ---- one fused score matmul for all batches & feature fields ----------
    # S[(b,f,m), (b',q)] = <in_memory[b,m,f,:], query[b',q,:]>
    scores = lax.dot_general(memin, q, (((1,), (1,)), ((), ())),
                             preferred_element_type=jnp.float32)   # (64, 16)

    # ---- masks (ctx/atten/query + cross-batch block), applied once --------
    bias = (keep - 1.0) * INF            # 0 where kept, -INF where masked
    scores = keep * scores + bias

    halves = []
    for b in range(B):
        r0 = b * F * M                   # first in-memory row of this batch
        ro = b * FO * M                  # first out-memory row of this batch
        c0 = b * TQ                      # first query column of this batch

        q_b = q[c0:c0 + TQ, :]           # (8, 32)
        qatt_b = qatt[c0:c0 + TQ, :]     # (8, 1)

        # contiguous per-feature row blocks (no strided access, no transposes)
        s_f = [scores[r0 + f * M:r0 + (f + 1) * M, :] for f in range(F)]
        min_f = [memin[r0 + f * M:r0 + (f + 1) * M, :] for f in range(F)]
        mout_f = [memout[ro + f * M:ro + (f + 1) * M, :] for f in range(FO)]

        # ---- kb_feature_att: max over queries, softmax over feature fields
        kfa = [jnp.max(s, axis=1, keepdims=True) for s in s_f]      # F x (8,1)
        kmax = kfa[0]
        for f in range(1, F):
            kmax = jnp.maximum(kmax, kfa[f])
        ef = [jnp.exp(k - kmax) for k in kfa]
        den = ef[0]
        for f in range(1, F):
            den = den + ef[f]
        inv = pl.reciprocal(den)                                     # exact
        wk = [e * inv for e in ef]

        # feature-weighted in-memory embedding -> (8, 32)
        in_mem = wk[0] * min_f[0]
        for f in range(1, F):
            in_mem = in_mem + wk[f] * min_f[f]

        # out-memory summed over feature fields -> (8, 32)
        out_sum = mout_f[0]
        for f in range(1, FO):
            out_sum = out_sum + mout_f[f]

        # ---- attention max-pooled over feature fields, (m, q) orientation -
        ap = s_f[0]
        for f in range(1, F):
            ap = jnp.maximum(ap, s_f[f])                             # (8, 16)
        ap = ap[:, c0:c0 + TQ]                                       # (8, 8)

        # probs : softmax over memory slots (axis 0 here)
        p = jnp.exp(ap - jnp.max(ap, axis=0, keepdims=True))
        probs = p * pl.reciprocal(jnp.sum(p, axis=0, keepdims=True))
        # probs2: softmax over query tokens (axis 1 here)
        p2 = jnp.exp(ap - jnp.max(ap, axis=1, keepdims=True))
        probs2 = p2 * pl.reciprocal(jnp.sum(p2, axis=1, keepdims=True))

        # new_query_embed = q + query_att * (probs contracted with out_sum)
        attended = lax.dot_general(probs, out_sum, (((0,), (0,)), ((), ())),
                                   preferred_element_type=jnp.float32)  # (8,32)
        new_q = q_b + qatt_b * attended

        # kb_att[m] = sum_q query_att[q] * probs[m, q]
        kb_att = lax.dot_general(probs, qatt_b, (((1,), (0,)), ((), ())),
                                 preferred_element_type=jnp.float32)    # (8, 1)

        # in_memory_embed += kb_att * (probs2^T contracted with new_query)
        ctx = lax.dot_general(probs2, new_q, (((1,), (0,)), ((), ())),
                              preferred_element_type=jnp.float32)       # (8, 32)
        in_mem = in_mem + kb_att * ctx

        halves.append(jnp.concatenate([new_q, in_mem, out_sum], axis=1))  # (8,96)

    # one lane-dense store for everything
    out_ref[...] = jnp.concatenate(halves, axis=0)                   # (16, 96)


# ---------------------------------------------------------------------------
# Wrapper: layout plumbing only (contiguous reshapes, feature-major transpose,
# mask packing) — no hidden compute is moved out of the kernel.
# ---------------------------------------------------------------------------
@jax.jit
def romhop_forward(query_embed, in_memory_embed, out_memory_embed, query_att,
                   atten_mask, ctx_mask, query_mask):
    f32 = jnp.float32
    q2d = query_embed.astype(f32).reshape(B * TQ, E)                       # (16,32)
    memin_f = jnp.transpose(in_memory_embed.astype(f32),
                            (0, 2, 1, 3)).reshape(B * F * M, E)            # (64,32)
    memout_f = jnp.transpose(out_memory_embed.astype(f32),
                             (0, 2, 1, 3)).reshape(B * FO * M, E)          # (64,32)

    am = atten_mask.astype(f32)      # (B, M)
    cm = ctx_mask.astype(f32)        # (B, M)
    qm = query_mask.astype(f32)      # (B, TQ)
    qa = query_att.astype(f32)       # (B, TQ)

    # keep[(b,f,m),(b',q)] = (b==b') * amask[b,m] * qmask[b',q]
    #                        * (cmask[b,m] if f == F-1 else 1)
    last_f = (jnp.arange(F) == F - 1).astype(f32)                          # (F,)
    row_keep = am[:, None, :] * (last_f[None, :, None] * cm[:, None, :]
                                 + (1.0 - last_f)[None, :, None])          # (B,F,M)
    eye = jnp.eye(B, dtype=f32)
    keep = (row_keep[:, :, :, None, None]
            * qm[None, None, None, :, :]
            * eye[:, None, None, :, None])                                 # (B,F,M,B,TQ)
    keep2d = keep.reshape(B * F * M, B * TQ)                               # (64,16)

    # pack query_att below the mask -> a single small aux operand (one DMA)
    qa_block = jnp.zeros((B * TQ, B * TQ), f32).at[:, 0].set(qa.reshape(-1))
    aux = jnp.concatenate([keep2d, qa_block], axis=0)                      # (80,16)

    out = pl.pallas_call(
        _romhop_kernel,
        out_shape=jax.ShapeDtypeStruct((B * TQ, 3 * E), jnp.float32),
    )(q2d, memin_f, memout_f, aux)                                         # (16,96)

    new_q = out[:, 0:E].reshape(B, TQ, E)
    in_mem = out[:, E:2 * E].reshape(B, M, E)
    out_sum = out[:, 2 * E:3 * E].reshape(B, M, E)
    return new_q, in_mem, out_sum


# ---------------------------------------------------------------------------
# Pure-JAX reference (mirrors the PyTorch math) for a correctness check
# ---------------------------------------------------------------------------
def reference(q, memin, memout, qatt, amask, cmask, qmask):
    att = jnp.einsum("bqe,bmfe->bqmf", q, memin)                  # (B,TQ,M,F)
    c = cmask[:, None, :]
    att = att.at[..., -1].set(c * att[..., -1] - (1.0 - c) * INF)
    a = amask[:, None, :, None]
    att = a * att - (1.0 - a) * INF
    qm = qmask[:, :, None, None]
    att = qm * att - (1.0 - qm) * INF

    kfa = jnp.max(att, axis=1)                                    # (B, M, F)
    wk = jax.nn.softmax(kfa, axis=-1)
    in_mem = jnp.einsum("bmf,bmfe->bme", wk, memin)
    out_sum = jnp.sum(memout, axis=2)                             # (B, M, E)

    ap = jnp.max(att, axis=-1)                                    # (B, TQ, M)
    probs = jax.nn.softmax(ap, axis=-1)
    new_q = q + qatt[:, :, None] * jnp.einsum("bqm,bme->bqe", probs, out_sum)
    probs2 = jax.nn.softmax(ap, axis=1)
    kb_att = jnp.einsum("bq,bqm->bm", qatt, probs)
    in_mem = in_mem + kb_att[:, :, None] * jnp.einsum("bqm,bqe->bme",
                                                      probs2, new_q)
    return new_q, in_mem, out_sum


if __name__ == "__main__":
    key = jax.random.PRNGKey(0)
    kq, kin, kout, ka = jax.random.split(key, 4)

    query_embed = jax.random.normal(kq, (B, TQ, E), jnp.float32)
    in_memory_embed = jax.random.normal(kin, (B, M, F, E), jnp.float32)
    out_memory_embed = jax.random.normal(kout, (B, M, FO, E), jnp.float32)
    query_att = jax.nn.softmax(
        jax.random.normal(ka, (B, TQ), jnp.float32), axis=-1)

    q_len = jnp.array([TQ, 5], dtype=jnp.int32)
    m_len = jnp.array([M, 6], dtype=jnp.int32)
    c_len = jnp.array([6, M], dtype=jnp.int32)
    query_mask = (jnp.arange(TQ)[None, :] < q_len[:, None]).astype(jnp.float32)
    atten_mask = (jnp.arange(M)[None, :] < m_len[:, None]).astype(jnp.float32)
    ctx_mask = (jnp.arange(M)[None, :] < c_len[:, None]).astype(jnp.float32)

    outs = romhop_forward(query_embed, in_memory_embed, out_memory_embed,
                          query_att, atten_mask, ctx_mask, query_mask)
    outs = jax.block_until_ready(outs)

    refs = reference(query_embed, in_memory_embed, out_memory_embed,
                     query_att, atten_mask, ctx_mask, query_mask)

    names = ("new_query_embed", "in_memory_embed", "out_memory_embed")
    for name, o, r in zip(names, outs, refs):
        assert o.shape == r.shape, (name, o.shape, r.shape)
        assert jnp.allclose(o, r, rtol=5e-3, atol=5e-3), (
            name, float(jnp.max(jnp.abs(o - r))))

    # TODO(synk): gru_step / gru_linear_z|r|t / gru_atten are dead code in
    # RomHop.forward, so they are intentionally not implemented.
    print("KERNEL_OK")
</pallas_src>

<mosaic_0001>
module attributes {stable_mosaic.version = 11 : i64} {
  func.func @_romhop_kernel(%arg0: memref<16x32xf32, #tpu.memory_space<vmem>>, %arg1: memref<64x32xf32, #tpu.memory_space<vmem>>, %arg2: memref<64x32xf32, #tpu.memory_space<vmem>>, %arg3: memref<80x16xf32, #tpu.memory_space<vmem>>, %arg4: memref<16x96xf32, #tpu.memory_space<vmem>>) attributes {dimension_semantics = [], scalar_prefetch = 0 : i64, scratch_operands = 0 : i64, tpu.core_type = #tpu.core_type<tc>} {
    %c0 = arith.constant 0 : index
    %c0_0 = arith.constant 0 : index
    %0 = vector.load %arg0[%c0, %c0_0] : memref<16x32xf32, #tpu.memory_space<vmem>>, vector<16x32xf32>
    %c0_1 = arith.constant 0 : index
    %c0_2 = arith.constant 0 : index
    %1 = vector.load %arg1[%c0_1, %c0_2] : memref<64x32xf32, #tpu.memory_space<vmem>>, vector<64x32xf32>
    %c0_3 = arith.constant 0 : index
    %c0_4 = arith.constant 0 : index
    %2 = vector.load %arg2[%c0_3, %c0_4] : memref<64x32xf32, #tpu.memory_space<vmem>>, vector<64x32xf32>
    %c0_5 = arith.constant 0 : index
    %c0_6 = arith.constant 0 : index
    %3 = vector.load %arg3[%c0_5, %c0_6] : memref<80x16xf32, #tpu.memory_space<vmem>>, vector<80x16xf32>
    %4 = vector.extract_strided_slice %3 {offsets = [0, 0], sizes = [64, 16], strides = [1, 1]} : vector<80x16xf32> to vector<64x16xf32>
    %5 = vector.extract_strided_slice %3 {offsets = [64, 0], sizes = [16, 1], strides = [1, 1]} : vector<80x16xf32> to vector<16x1xf32>
    %cst = arith.constant dense<0.000000e+00> : vector<64x16xf32>
    %6 = tpu.matmul %1, %0, %cst {dimension_numbers = #tpu.dot_dimension_numbers<[1], [1], [0], [0], [0, 0, 1, 0], [], []>} : vector<64x32xf32>, vector<16x32xf32>, vector<64x16xf32> -> vector<64x16xf32>
    %cst_7 = arith.constant 1.000000e+00 : f32
    %7 = vector.broadcast %cst_7 : f32 to vector<64x16xf32>
    %8 = arith.subf %4, %7 : vector<64x16xf32>
    %cst_8 = arith.constant 1.000000e+20 : f32
    %9 = vector.broadcast %cst_8 : f32 to vector<64x16xf32>
    %10 = arith.mulf %8, %9 : vector<64x16xf32>
    %11 = arith.mulf %4, %6 : vector<64x16xf32>
    %12 = arith.addf %11, %10 : vector<64x16xf32>
    %13 = vector.extract_strided_slice %0 {offsets = [0, 0], sizes = [8, 32], strides = [1, 1]} : vector<16x32xf32> to vector<8x32xf32>
    %14 = vector.extract_strided_slice %5 {offsets = [0, 0], sizes = [8, 1], strides = [1, 1]} : vector<16x1xf32> to vector<8x1xf32>
    %15 = vector.extract_strided_slice %12 {offsets = [0, 0], sizes = [8, 16], strides = [1, 1]} : vector<64x16xf32> to vector<8x16xf32>
    %16 = vector.extract_strided_slice %12 {offsets = [8, 0], sizes = [8, 16], strides = [1, 1]} : vector<64x16xf32> to vector<8x16xf32>
    %17 = vector.extract_strided_slice %12 {offsets = [16, 0], sizes = [8, 16], strides = [1, 1]} : vector<64x16xf32> to vector<8x16xf32>
    %18 = vector.extract_strided_slice %12 {offsets = [24, 0], sizes = [8, 16], strides = [1, 1]} : vector<64x16xf32> to vector<8x16xf32>
    %19 = vector.extract_strided_slice %1 {offsets = [0, 0], sizes = [8, 32], strides = [1, 1]} : vector<64x32xf32> to vector<8x32xf32>
    %20 = vector.extract_strided_slice %1 {offsets = [8, 0], sizes = [8, 32], strides = [1, 1]} : vector<64x32xf32> to vector<8x32xf32>
    %21 = vector.extract_strided_slice %1 {offsets = [16, 0], sizes = [8, 32], strides = [1, 1]} : vector<64x32xf32> to vector<8x32xf32>
    %22 = vector.extract_strided_slice %1 {offsets = [24, 0], sizes = [8, 32], strides = [1, 1]} : vector<64x32xf32> to vector<8x32xf32>
    %23 = vector.extract_strided_slice %2 {offsets = [0, 0], sizes = [8, 32], strides = [1, 1]} : vector<64x32xf32> to vector<8x32xf32>
    %24 = vector.extract_strided_slice %2 {offsets = [8, 0], sizes = [8, 32], strides = [1, 1]} : vector<64x32xf32> to vector<8x32xf32>
    %25 = vector.extract_strided_slice %2 {offsets = [16, 0], sizes = [8, 32], strides = [1, 1]} : vector<64x32xf32> to vector<8x32xf32>
    %26 = vector.extract_strided_slice %2 {offsets = [24, 0], sizes = [8, 32], strides = [1, 1]} : vector<64x32xf32> to vector<8x32xf32>
    %cst_9 = arith.constant dense<0xFF800000> : vector<8xf32>
    %27 = vector.multi_reduction <maximumf>, %15, %cst_9 [1] : vector<8x16xf32> to vector<8xf32>
    %28 = vector.shape_cast %27 : vector<8xf32> to vector<8x1xf32>
    %cst_10 = arith.constant dense<0xFF800000> : vector<8xf32>
    %29 = vector.multi_reduction <maximumf>, %16, %cst_10 [1] : vector<8x16xf32> to vector<8xf32>
    %30 = vector.shape_cast %29 : vector<8xf32> to vector<8x1xf32>
    %cst_11 = arith.constant dense<0xFF800000> : vector<8xf32>
    %31 = vector.multi_reduction <maximumf>, %17, %cst_11 [1] : vector<8x16xf32> to vector<8xf32>
    %32 = vector.shape_cast %31 : vector<8xf32> to vector<8x1xf32>
    %cst_12 = arith.constant dense<0xFF800000> : vector<8xf32>
    %33 = vector.multi_reduction <maximumf>, %18, %cst_12 [1] : vector<8x16xf32> to vector<8xf32>
    %34 = vector.shape_cast %33 : vector<8xf32> to vector<8x1xf32>
    %35 = arith.maximumf %28, %30 : vector<8x1xf32>
    %36 = arith.maximumf %35, %32 : vector<8x1xf32>
    %37 = arith.maximumf %36, %34 : vector<8x1xf32>
    %38 = arith.subf %28, %37 : vector<8x1xf32>
    %39 = math.exp %38 : vector<8x1xf32>
    %40 = arith.subf %30, %37 : vector<8x1xf32>
    %41 = math.exp %40 : vector<8x1xf32>
    %42 = arith.subf %32, %37 : vector<8x1xf32>
    %43 = math.exp %42 : vector<8x1xf32>
    %44 = arith.subf %34, %37 : vector<8x1xf32>
    %45 = math.exp %44 : vector<8x1xf32>
    %46 = arith.addf %39, %41 : vector<8x1xf32>
    %47 = arith.addf %46, %43 : vector<8x1xf32>
    %48 = arith.addf %47, %45 : vector<8x1xf32>
    %49 = tpu.reciprocal %48 : vector<8x1xf32> -> vector<8x1xf32>
    %50 = arith.mulf %39, %49 : vector<8x1xf32>
    %51 = arith.mulf %41, %49 : vector<8x1xf32>
    %52 = arith.mulf %43, %49 : vector<8x1xf32>
    %53 = arith.mulf %45, %49 : vector<8x1xf32>
    %54 = vector.broadcast %50 : vector<8x1xf32> to vector<8x32xf32>
    %55 = arith.mulf %54, %19 : vector<8x32xf32>
    %56 = vector.broadcast %51 : vector<8x1xf32> to vector<8x32xf32>
    %57 = arith.mulf %56, %20 : vector<8x32xf32>
    %58 = arith.addf %55, %57 : vector<8x32xf32>
    %59 = vector.broadcast %52 : vector<8x1xf32> to vector<8x32xf32>
    %60 = arith.mulf %59, %21 : vector<8x32xf32>
    %61 = arith.addf %58, %60 : vector<8x32xf32>
    %62 = vector.broadcast %53 : vector<8x1xf32> to vector<8x32xf32>
    %63 = arith.mulf %62, %22 : vector<8x32xf32>
    %64 = arith.addf %61, %63 : vector<8x32xf32>
    %65 = arith.addf %23, %24 : vector<8x32xf32>
    %66 = arith.addf %65, %25 : vector<8x32xf32>
    %67 = arith.addf %66, %26 : vector<8x32xf32>
    %68 = arith.maximumf %15, %16 : vector<8x16xf32>
    %69 = arith.maximumf %68, %17 : vector<8x16xf32>
    %70 = arith.maximumf %69, %18 : vector<8x16xf32>
    %71 = vector.extract_strided_slice %70 {offsets = [0, 0], sizes = [8, 8], strides = [1, 1]} : vector<8x16xf32> to vector<8x8xf32>
    %cst_13 = arith.constant dense<0xFF800000> : vector<8xf32>
    %72 = vector.multi_reduction <maximumf>, %71, %cst_13 [0] : vector<8x8xf32> to vector<8xf32>
    %73 = vector.shape_cast %72 : vector<8xf32> to vector<1x8xf32>
    %74 = vector.broadcast %73 : vector<1x8xf32> to vector<8x8xf32>
    %75 = arith.subf %71, %74 : vector<8x8xf32>
    %76 = math.exp %75 : vector<8x8xf32>
    %cst_14 = arith.constant dense<0.000000e+00> : vector<8xf32>
    %77 = vector.multi_reduction <add>, %76, %cst_14 [0] : vector<8x8xf32> to vector<8xf32>
    %78 = vector.shape_cast %77 : vector<8xf32> to vector<1x8xf32>
    %79 = tpu.reciprocal %78 : vector<1x8xf32> -> vector<1x8xf32>
    %80 = vector.broadcast %79 : vector<1x8xf32> to vector<8x8xf32>
    %81 = arith.mulf %76, %80 : vector<8x8xf32>
    %cst_15 = arith.constant dense<0xFF800000> : vector<8xf32>
    %82 = vector.multi_reduction <maximumf>, %71, %cst_15 [1] : vector<8x8xf32> to vector<8xf32>
    %83 = vector.shape_cast %82 : vector<8xf32> to vector<8x1xf32>
    %84 = vector.broadcast %83 : vector<8x1xf32> to vector<8x8xf32>
    %85 = arith.subf %71, %84 : vector<8x8xf32>
    %86 = math.exp %85 : vector<8x8xf32>
    %cst_16 = arith.constant dense<0.000000e+00> : vector<8xf32>
    %87 = vector.multi_reduction <add>, %86, %cst_16 [1] : vector<8x8xf32> to vector<8xf32>
    %88 = vector.shape_cast %87 : vector<8xf32> to vector<8x1xf32>
    %89 = tpu.reciprocal %88 : vector<8x1xf32> -> vector<8x1xf32>
    %90 = vector.broadcast %89 : vector<8x1xf32> to vector<8x8xf32>
    %91 = arith.mulf %86, %90 : vector<8x8xf32>
    %cst_17 = arith.constant dense<0.000000e+00> : vector<8x32xf32>
    %92 = tpu.matmul %81, %67, %cst_17 {dimension_numbers = #tpu.dot_dimension_numbers<[0], [0], [1], [1], [0, 1, 1, 1], [], []>} : vector<8x8xf32>, vector<8x32xf32>, vector<8x32xf32> -> vector<8x32xf32>
    %93 = vector.broadcast %14 : vector<8x1xf32> to vector<8x32xf32>
    %94 = arith.mulf %93, %92 : vector<8x32xf32>
    %95 = arith.addf %13, %94 : vector<8x32xf32>
    %cst_18 = arith.constant dense<0.000000e+00> : vector<8x1xf32>
    %96 = tpu.matmul %81, %14, %cst_18 {dimension_numbers = #tpu.dot_dimension_numbers<[1], [0], [0], [1], [0, 0, 1, 1], [], []>} : vector<8x8xf32>, vector<8x1xf32>, vector<8x1xf32> -> vector<8x1xf32>
    %cst_19 = arith.constant dense<0.000000e+00> : vector<8x32xf32>
    %97 = tpu.matmul %91, %95, %cst_19 {dimension_numbers = #tpu.dot_dimension_numbers<[1], [0], [0], [1], [0, 0, 1, 1], [], []>} : vector<8x8xf32>, vector<8x32xf32>, vector<8x32xf32> -> vector<8x32xf32>
    %98 = vector.broadcast %96 : vector<8x1xf32> to vector<8x32xf32>
    %99 = arith.mulf %98, %97 : vector<8x32xf32>
    %100 = arith.addf %64, %99 : vector<8x32xf32>
    %101 = tpu.concatenate %95, %100, %67 in 1 : vector<8x32xf32>, vector<8x32xf32>, vector<8x32xf32> -> vector<8x96xf32>
    %102 = vector.extract_strided_slice %0 {offsets = [8, 0], sizes = [8, 32], strides = [1, 1]} : vector<16x32xf32> to vector<8x32xf32>
    %103 = vector.extract_strided_slice %5 {offsets = [8, 0], sizes = [8, 1], strides = [1, 1]} : vector<16x1xf32> to vector<8x1xf32>
    %104 = vector.extract_strided_slice %12 {offsets = [32, 0], sizes = [8, 16], strides = [1, 1]} : vector<64x16xf32> to vector<8x16xf32>
    %105 = vector.extract_strided_slice %12 {offsets = [40, 0], sizes = [8, 16], strides = [1, 1]} : vector<64x16xf32> to vector<8x16xf32>
    %106 = vector.extract_strided_slice %12 {offsets = [48, 0], sizes = [8, 16], strides = [1, 1]} : vector<64x16xf32> to vector<8x16xf32>
    %107 = vector.extract_strided_slice %12 {offsets = [56, 0], sizes = [8, 16], strides = [1, 1]} : vector<64x16xf32> to vector<8x16xf32>
    %108 = vector.extract_strided_slice %1 {offsets = [32, 0], sizes = [8, 32], strides = [1, 1]} : vector<64x32xf32> to vector<8x32xf32>
    %109 = vector.extract_strided_slice %1 {offsets = [40, 0], sizes = [8, 32], strides = [1, 1]} : vector<64x32xf32> to vector<8x32xf32>
    %110 = vector.extract_strided_slice %1 {offsets = [48, 0], sizes = [8, 32], strides = [1, 1]} : vector<64x32xf32> to vector<8x32xf32>
    %111 = vector.extract_strided_slice %1 {offsets = [56, 0], sizes = [8, 32], strides = [1, 1]} : vector<64x32xf32> to vector<8x32xf32>
    %112 = vector.extract_strided_slice %2 {offsets = [32, 0], sizes = [8, 32], strides = [1, 1]} : vector<64x32xf32> to vector<8x32xf32>
    %113 = vector.extract_strided_slice %2 {offsets = [40, 0], sizes = [8, 32], strides = [1, 1]} : vector<64x32xf32> to vector<8x32xf32>
    %114 = vector.extract_strided_slice %2 {offsets = [48, 0], sizes = [8, 32], strides = [1, 1]} : vector<64x32xf32> to vector<8x32xf32>
    %115 = vector.extract_strided_slice %2 {offsets = [56, 0], sizes = [8, 32], strides = [1, 1]} : vector<64x32xf32> to vector<8x32xf32>
    %cst_20 = arith.constant dense<0xFF800000> : vector<8xf32>
    %116 = vector.multi_reduction <maximumf>, %104, %cst_20 [1] : vector<8x16xf32> to vector<8xf32>
    %117 = vector.shape_cast %116 : vector<8xf32> to vector<8x1xf32>
    %cst_21 = arith.constant dense<0xFF800000> : vector<8xf32>
    %118 = vector.multi_reduction <maximumf>, %105, %cst_21 [1] : vector<8x16xf32> to vector<8xf32>
    %119 = vector.shape_cast %118 : vector<8xf32> to vector<8x1xf32>
    %cst_22 = arith.constant dense<0xFF800000> : vector<8xf32>
    %120 = vector.multi_reduction <maximumf>, %106, %cst_22 [1] : vector<8x16xf32> to vector<8xf32>
    %121 = vector.shape_cast %120 : vector<8xf32> to vector<8x1xf32>
    %cst_23 = arith.constant dense<0xFF800000> : vector<8xf32>
    %122 = vector.multi_reduction <maximumf>, %107, %cst_23 [1] : vector<8x16xf32> to vector<8xf32>
    %123 = vector.shape_cast %122 : vector<8xf32> to vector<8x1xf32>
    %124 = arith.maximumf %117, %119 : vector<8x1xf32>
    %125 = arith.maximumf %124, %121 : vector<8x1xf32>
    %126 = arith.maximumf %125, %123 : vector<8x1xf32>
    %127 = arith.subf %117, %126 : vector<8x1xf32>
    %128 = math.exp %127 : vector<8x1xf32>
    %129 = arith.subf %119, %126 : vector<8x1xf32>
    %130 = math.exp %129 : vector<8x1xf32>
    %131 = arith.subf %121, %126 : vector<8x1xf32>
    %132 = math.exp %131 : vector<8x1xf32>
    %133 = arith.subf %123, %126 : vector<8x1xf32>
    %134 = math.exp %133 : vector<8x1xf32>
    %135 = arith.addf %128, %130 : vector<8x1xf32>
    %136 = arith.addf %135, %132 : vector<8x1xf32>
    %137 = arith.addf %136, %134 : vector<8x1xf32>
    %138 = tpu.reciprocal %137 : vector<8x1xf32> -> vector<8x1xf32>
    %139 = arith.mulf %128, %138 : vector<8x1xf32>
    %140 = arith.mulf %130, %138 : vector<8x1xf32>
    %141 = arith.mulf %132, %138 : vector<8x1xf32>
    %142 = arith.mulf %134, %138 : vector<8x1xf32>
    %143 = vector.broadcast %139 : vector<8x1xf32> to vector<8x32xf32>
    %144 = arith.mulf %143, %108 : vector<8x32xf32>
    %145 = vector.broadcast %140 : vector<8x1xf32> to vector<8x32xf32>
    %146 = arith.mulf %145, %109 : vector<8x32xf32>
    %147 = arith.addf %144, %146 : vector<8x32xf32>
    %148 = vector.broadcast %141 : vector<8x1xf32> to vector<8x32xf32>
    %149 = arith.mulf %148, %110 : vector<8x32xf32>
    %150 = arith.addf %147, %149 : vector<8x32xf32>
    %151 = vector.broadcast %142 : vector<8x1xf32> to vector<8x32xf32>
    %152 = arith.mulf %151, %111 : vector<8x32xf32>
    %153 = arith.addf %150, %152 : vector<8x32xf32>
    %154 = arith.addf %112, %113 : vector<8x32xf32>
    %155 = arith.addf %154, %114 : vector<8x32xf32>
    %156 = arith.addf %155, %115 : vector<8x32xf32>
    %157 = arith.maximumf %104, %105 : vector<8x16xf32>
    %158 = arith.maximumf %157, %106 : vector<8x16xf32>
    %159 = arith.maximumf %158, %107 : vector<8x16xf32>
    %160 = vector.extract_strided_slice %159 {offsets = [0, 8], sizes = [8, 8], strides = [1, 1]} : vector<8x16xf32> to vector<8x8xf32>
    %cst_24 = arith.constant dense<0xFF800000> : vector<8xf32>
    %161 = vector.multi_reduction <maximumf>, %160, %cst_24 [0] : vector<8x8xf32> to vector<8xf32>
    %162 = vector.shape_cast %161 : vector<8xf32> to vector<1x8xf32>
    %163 = vector.broadcast %162 : vector<1x8xf32> to vector<8x8xf32>
    %164 = arith.subf %160, %163 : vector<8x8xf32>
    %165 = math.exp %164 : vector<8x8xf32>
    %cst_25 = arith.constant dense<0.000000e+00> : vector<8xf32>
    %166 = vector.multi_reduction <add>, %165, %cst_25 [0] : vector<8x8xf32> to vector<8xf32>
    %167 = vector.shape_cast %166 : vector<8xf32> to vector<1x8xf32>
    %168 = tpu.reciprocal %167 : vector<1x8xf32> -> vector<1x8xf32>
    %169 = vector.broadcast %168 : vector<1x8xf32> to vector<8x8xf32>
    %170 = arith.mulf %165, %169 : vector<8x8xf32>
    %cst_26 = arith.constant dense<0xFF800000> : vector<8xf32>
    %171 = vector.multi_reduction <maximumf>, %160, %cst_26 [1] : vector<8x8xf32> to vector<8xf32>
    %172 = vector.shape_cast %171 : vector<8xf32> to vector<8x1xf32>
    %173 = vector.broadcast %172 : vector<8x1xf32> to vector<8x8xf32>
    %174 = arith.subf %160, %173 : vector<8x8xf32>
    %175 = math.exp %174 : vector<8x8xf32>
    %cst_27 = arith.constant dense<0.000000e+00> : vector<8xf32>
    %176 = vector.multi_reduction <add>, %175, %cst_27 [1] : vector<8x8xf32> to vector<8xf32>
    %177 = vector.shape_cast %176 : vector<8xf32> to vector<8x1xf32>
    %178 = tpu.reciprocal %177 : vector<8x1xf32> -> vector<8x1xf32>
    %179 = vector.broadcast %178 : vector<8x1xf32> to vector<8x8xf32>
    %180 = arith.mulf %175, %179 : vector<8x8xf32>
    %cst_28 = arith.constant dense<0.000000e+00> : vector<8x32xf32>
    %181 = tpu.matmul %170, %156, %cst_28 {dimension_numbers = #tpu.dot_dimension_numbers<[0], [0], [1], [1], [0, 1, 1, 1], [], []>} : vector<8x8xf32>, vector<8x32xf32>, vector<8x32xf32> -> vector<8x32xf32>
    %182 = vector.broadcast %103 : vector<8x1xf32> to vector<8x32xf32>
    %183 = arith.mulf %182, %181 : vector<8x32xf32>
    %184 = arith.addf %102, %183 : vector<8x32xf32>
    %cst_29 = arith.constant dense<0.000000e+00> : vector<8x1xf32>
    %185 = tpu.matmul %170, %103, %cst_29 {dimension_numbers = #tpu.dot_dimension_numbers<[1], [0], [0], [1], [0, 0, 1, 1], [], []>} : vector<8x8xf32>, vector<8x1xf32>, vector<8x1xf32> -> vector<8x1xf32>
    %cst_30 = arith.constant dense<0.000000e+00> : vector<8x32xf32>
    %186 = tpu.matmul %180, %184, %cst_30 {dimension_numbers = #tpu.dot_dimension_numbers<[1], [0], [0], [1], [0, 0, 1, 1], [], []>} : vector<8x8xf32>, vector<8x32xf32>, vector<8x32xf32> -> vector<8x32xf32>
    %187 = vector.broadcast %185 : vector<8x1xf32> to vector<8x32xf32>
    %188 = arith.mulf %187, %186 : vector<8x32xf32>
    %189 = arith.addf %153, %188 : vector<8x32xf32>
    %190 = tpu.concatenate %184, %189, %156 in 1 : vector<8x32xf32>, vector<8x32xf32>, vector<8x32xf32> -> vector<8x96xf32>
    %191 = tpu.concatenate %101, %190 in 0 : vector<8x96xf32>, vector<8x96xf32> -> vector<16x96xf32>
    %c0_31 = arith.constant 0 : index
    %c0_32 = arith.constant 0 : index
    %192 = vector.load %arg4[%c0_31, %c0_32] : memref<16x96xf32, #tpu.memory_space<vmem>>, vector<16x96xf32>
    tpu.vector_store %arg4[%c0_31, %c0_32], %191 {strides = array<i32>} : memref<16x96xf32, #tpu.memory_space<vmem>>, vector<16x96xf32>,
    return
  }
}

</mosaic_0001>

<llo_original>
// kernel: romhop_forward.1
$region0: #{romhop_forward.1}
  #allocation0 [shape = 'u32[]', space=smem, size = 0x4, offset = 0x4, fixed_abs, tag = 'smem constant byte address 0x4 - core index']
  #allocation1 [shape = 'u32[72,128]{1,0:T(1,128)}', space=vmem, size = 0x9000, scoped, tag = 'internal scratch']
  %s0 = inlined_call_operand.vmem [shape: f32[16,32], index: 0, kind: input, shape index: {}]
  %s1 = inlined_call_operand.vmem [shape: f32[64,32], index: 1, kind: input, shape index: {}]
  %s2 = inlined_call_operand.vmem [shape: f32[64,32], index: 2, kind: input, shape index: {}]
  %s3 = inlined_call_operand.vmem [shape: f32[80,16], index: 3, kind: input, shape index: {}]
  %s4 = inlined_call_operand.vmem [shape: f32[16,96], index: 4, kind: output, shape index: {}]
  %s5 = sld [smem:[#allocation0]]
  $region26: #{romhop_forward.1} parent=0
    _
  %s7 = ssub.s32 1, %s5
  %s8 = scalar_select 0, %s7, %s5
  // Predicated region
  $region2: #{romhop_forward.1} parent=0 // pred_check
    _
  $region3: #{romhop_forward.1} parent=0 // pred_check_branch
    %10 = sbr.rel (0) target = $region5
  $region4: #{romhop_forward.1} parent=0 // pred_region
    _
  $region5: #{romhop_forward.1} parent=0 // pred_fallthru
    _
  // Predicated region
  $region6: #{romhop_forward.1} parent=0 // pred_check
    _
  $region7: #{romhop_forward.1} parent=0 // pred_check_branch
    %12 = sbr.rel (0) target = $region9
  $region8: #{romhop_forward.1} parent=0 // pred_region
    _
  $region9: #{romhop_forward.1} parent=0 // pred_fallthru
    _
  // Predicated region
  $region10: #{romhop_forward.1} parent=0 // pred_check
    _
  $region11: #{romhop_forward.1} parent=0 // pred_check_branch
    %14 = sbr.rel (0) target = $region13
  $region12: #{romhop_forward.1} parent=0 // pred_region
    _
  $region13: #{romhop_forward.1} parent=0 // pred_fallthru
    _
  // Predicated region
  $region14: #{romhop_forward.1} parent=0 // pred_check
    _
  $region15: #{romhop_forward.1} parent=0 // pred_check_branch
    %16 = sbr.rel (0) target = $region17
  $region16: #{romhop_forward.1} parent=0 // pred_region
    _
  $region17: #{romhop_forward.1} parent=0 // pred_fallthru
    _
  %v17 = vld [vmem:[%s0] sm:$0xff]
  %v18 = vld [vmem:[%s0 + $0x8] sm:$0xff]
  %v19 = vld [vmem:[%s1] sm:$0xff]
  %v20 = vld [vmem:[%s1 + $0x8] sm:$0xff]
  %v21 = vld [vmem:[%s1 + $0x10] sm:$0xff]
  %v22 = vld [vmem:[%s1 + $0x18] sm:$0xff]
  %v23 = vld [vmem:[%s1 + $0x20] sm:$0xff]
  %v24 = vld [vmem:[%s1 + $0x28] sm:$0xff]
  %v25 = vld [vmem:[%s1 + $0x30] sm:$0xff]
  %v26 = vld [vmem:[%s1 + $0x38] sm:$0xff]
  %v27 = vld [vmem:[%s2] sm:$0xff]
  %v28 = vld [vmem:[%s2 + $0x8] sm:$0xff]
  %v29 = vld [vmem:[%s2 + $0x10] sm:$0xff]
  %v30 = vld [vmem:[%s2 + $0x18] sm:$0xff]
  %v31 = vld [vmem:[%s2 + $0x20] sm:$0xff]
  %v32 = vld [vmem:[%s2 + $0x28] sm:$0xff]
  %v33 = vld [vmem:[%s2 + $0x30] sm:$0xff]
  %v34 = vld [vmem:[%s2 + $0x38] sm:$0xff]
  %v35 = vld [vmem:[%s3] sm:$0xff]
  %v36 = vld [vmem:[%s3 + $0x8] sm:$0xff]
  %v37 = vld [vmem:[%s3 + $0x10] sm:$0xff]
  %v38 = vld [vmem:[%s3 + $0x18] sm:$0xff]
  %v39 = vld [vmem:[%s3 + $0x20] sm:$0xff]
  %v40 = vld [vmem:[%s3 + $0x28] sm:$0xff]
  %v41 = vld [vmem:[%s3 + $0x30] sm:$0xff]
  %v42 = vld [vmem:[%s3 + $0x38] sm:$0xff]
  %v43 = vld [vmem:[%s3 + $0x40] sm:$0xff]
  %v44 = vld [vmem:[%s3 + $0x48] sm:$0xff]
  %vm45 = vcmask 261120
  %v47 = vsel %vm45, %v19, 0
  %v50 = vsel %vm45, %v20, 0
  %v53 = vsel %vm45, %v21, 0
  %v56 = vsel %vm45, %v22, 0
  %v59 = vsel %vm45, %v23, 0
  %v62 = vsel %vm45, %v24, 0
  %v65 = vsel %vm45, %v25, 0
  %v68 = vsel %vm45, %v26, 0
  %v71 = vsel %vm45, %v17, 0
  %v74 = vsel %vm45, %v18, 0
  %76 = vmatpush.xpose.msra.mxu0 0.0
  %77 = vmatpush.xpose.msra.mxu0 0.0
  %78 = vmatpush.xpose.msra.mxu0 0.0
  %79 = vmatpush.xpose.msra.mxu0 0.0
  %80 = vmatpush.xpose.msra.mxu0 0.0
  %81 = vmatpush.xpose.msra.mxu0 0.0
  %82 = vmatpush.xpose.msra.mxu0 0.0
  %83 = vmatpush.xpose.msra.mxu0 0.0
  %84 = vmatpush.xpose.msra.mxu0 0.0
  %85 = vmatpush.xpose.msra.mxu0 0.0
  %86 = vmatpush.xpose.msra.mxu0 0.0
  %87 = vmatpush.xpose.msra.mxu0 0.0
  %88 = vmatpush.xpose.msra.mxu0 0.0
  %89 = vmatpush.xpose.msra.mxu0 0.0
  %90 = vmatpush.xpose.msra.mxu0 %v74
  %91 = vmatpush.xpose.msra.mxu0 %v71
  %92 = vmatmul.f32.gmra.mxu0 %v47
  %v93 = vpop.f32.mrf.mxu0
  %v94 = vadd.f32 0.0, %v93
  %95 = vmatmul.f32.gmra.mxu0 %v50
  %v96 = vpop.f32.mrf.mxu0
  %v97 = vadd.f32 0.0, %v96
  %98 = vmatmul.f32.gmra.mxu0 %v53
  %v99 = vpop.f32.mrf.mxu0
  %v100 = vadd.f32 0.0, %v99
  %101 = vmatmul.f32.gmra.mxu0 %v56
  %v102 = vpop.f32.mrf.mxu0
  %v103 = vadd.f32 0.0, %v102
  %104 = vmatmul.f32.gmra.mxu0 %v59
  %v105 = vpop.f32.mrf.mxu0
  %v106 = vadd.f32 0.0, %v105
  %107 = vmatmul.f32.gmra.mxu0 %v62
  %v108 = vpop.f32.mrf.mxu0
  %v109 = vadd.f32 0.0, %v108
  %110 = vmatmul.f32.gmra.mxu0 %v65
  %v111 = vpop.f32.mrf.mxu0
  %v112 = vadd.f32 0.0, %v111
  %113 = vmatmul.f32.gmra.mxu0 %v68
  %v114 = vpop.f32.mrf.mxu0
  %v115 = vadd.f32 0.0, %v114
  %116 = vdwg.mxu0
  %v117 = vsub.f32 %v35, 1.0
  %v118 = vsub.f32 %v36, 1.0
  %v119 = vsub.f32 %v37, 1.0
  %v120 = vsub.f32 %v38, 1.0
  %v121 = vsub.f32 %v39, 1.0
  %v122 = vsub.f32 %v40, 1.0
  %v123 = vsub.f32 %v41, 1.0
  %v124 = vsub.f32 %v42, 1.0
  %v125 = vmul.f32 %v117, 1e+20
  %v126 = vmul.f32 %v118, 1e+20
  %v127 = vmul.f32 %v119, 1e+20
  %v128 = vmul.f32 %v120, 1e+20
  %v129 = vmul.f32 %v121, 1e+20
  %v130 = vmul.f32 %v122, 1e+20
  %v131 = vmul.f32 %v123, 1e+20
  %v132 = vmul.f32 %v124, 1e+20
  %v133 = vmul.f32 %v35, %v94
  %v134 = vmul.f32 %v36, %v97
  %v135 = vmul.f32 %v37, %v100
  %v136 = vmul.f32 %v38, %v103
  %v137 = vmul.f32 %v39, %v106
  %v138 = vmul.f32 %v40, %v109
  %v139 = vmul.f32 %v41, %v112
  %v140 = vmul.f32 %v42, %v115
  %v141 = vadd.f32 %v133, %v125
  %v142 = vadd.f32 %v134, %v126
  %v143 = vadd.f32 %v135, %v127
  %v144 = vadd.f32 %v136, %v128
  %v145 = vadd.f32 %v137, %v129
  %v146 = vadd.f32 %v138, %v130
  %v147 = vadd.f32 %v139, %v131
  %v148 = vadd.f32 %v140, %v132
  %vm149 = vcmask 130048
  %v150 = vsel %vm149, %v141, -inf
  %151 = vmax.xlane.f32.xlu0 %v150
  %v152 = vpop.xlane.xlu0 %151
  %v153 = vsel %vm149, %v142, -inf
  %154 = vmax.xlane.f32.xlu0 %v153
  %v155 = vpop.xlane.xlu0 %154
  %v156 = vsel %vm149, %v143, -inf
  %157 = vmax.xlane.f32.xlu0 %v156
  %v158 = vpop.xlane.xlu0 %157
  %v159 = vsel %vm149, %v144, -inf
  %160 = vmax.xlane.f32.xlu0 %v159
  %v161 = vpop.xlane.xlu0 %160
  %v162 = vmax.f32 %v152, %v155
  %v163 = vmax.f32 %v162, %v158
  %v164 = vmax.f32 %v163, %v161
  %v165 = vsub.f32 %v152, %v164
  %v166 = vmul.f32 %v165, 1.442695
  %v167 = vpow.pop %v166
  %v168 = vsub.f32 %v155, %v164
  %v169 = vmul.f32 %v168, 1.442695
  %v170 = vpow.pop %v169
  %v171 = vsub.f32 %v158, %v164
  %v172 = vmul.f32 %v171, 1.442695
  %v173 = vpow.pop %v172
  %v174 = vsub.f32 %v161, %v164
  %v175 = vmul.f32 %v174, 1.442695
  %v176 = vpow.pop %v175
  %v177 = vadd.f32 %v167, %v170
  %v178 = vadd.f32 %v177, %v173
  %v179 = vadd.f32 %v178, %v176
  %v180 = vrcp.pop %v179
  %v181 = vmul.f32 %v179, %v180
  %v182 = vsub.f32 1.0, %v181
  %v183 = vmul.f32 %v180, %v182
  %v184 = vadd.f32 %v180, %v183
  %vm185 = vweird.f32 %v179
  %vm186 = vweird.f32 %v180
  %vm187 = vmor %vm185, %vm186
  %v188 = vsel %vm187, %v180, %v184
  %v189 = vand.u32 2147483647, %v179
  %vm190 = vcmp.eq.f32.partialorder %v189, 8.507059e+37
  %v191 = vand.u32 %v179, 2147483648
  %v192 = vor.u32 1.1754944e-38, %v191
  %v193 = vsel %vm190, %v192, %v188
  %v194 = vmul.f32 %v167, %v193
  %v195 = vmul.f32 %v170, %v193
  %v196 = vmul.f32 %v173, %v193
  %v197 = vmul.f32 %v176, %v193
  %v198 = vmul.f32 %v194, %v19
  %v199 = vmul.f32 %v195, %v20
  %v200 = vadd.f32 %v198, %v199
  %v201 = vmul.f32 %v196, %v21
  %v202 = vadd.f32 %v200, %v201
  %v203 = vmul.f32 %v197, %v22
  %v204 = vadd.f32 %v202, %v203
  %v205 = vadd.f32 %v27, %v28
  %v206 = vadd.f32 %v205, %v29
  %v207 = vadd.f32 %v206, %v30
  %v208 = vmax.f32 %v141, %v142
  %v209 = vmax.f32 %v208, %v143
  %v210 = vmax.f32 %v209, %v144
  %vm211 = vcmask 64512
  %v212 = vsel %vm211, %v210, -inf
  %v213 = vrot.slane %v212, 4
  %v214 = vmax.f32 %v212, %v213
  %v215 = vrot.slane %v214, 2
  %v216 = vmax.f32 %v214, %v215
  %v217 = vrot.slane %v216, 1
  %v218 = vmax.f32 %v216, %v217
  %v219 = vsub.f32 %v210, %v218
  %v220 = vmul.f32 %v219, 1.442695
  %v221 = vpow.pop %v220
  %v222 = vsel %vm211, %v221, 0.0
  %v223 = vrot.slane %v222, 4
  %v224 = vadd.f32 %v222, %v223
  %v225 = vrot.slane %v224, 2
  %v226 = vadd.f32 %v224, %v225
  %v227 = vrot.slane %v226, 1
  %v228 = vadd.f32 %v226, %v227
  %v229 = vrcp.pop %v228
  %v230 = vmul.f32 %v228, %v229
  %v231 = vsub.f32 1.0, %v230
  %v232 = vmul.f32 %v229, %v231
  %v233 = vadd.f32 %v229, %v232
  %vm234 = vweird.f32 %v228
  %vm235 = vweird.f32 %v229
  %vm236 = vmor %vm234, %vm235
  %v237 = vsel %vm236, %v229, %v233
  %v238 = vand.u32 2147483647, %v228
  %vm239 = vcmp.eq.f32.partialorder %v238, 8.507059e+37
  %v240 = vand.u32 %v228, 2147483648
  %v241 = vor.u32 1.1754944e-38, %v240
  %v242 = vsel %vm239, %v241, %v237
  %v243 = vmul.f32 %v221, %v242
  %244 = vmax.xlane.f32.xlu0 %v212
  %v245 = vpop.xlane.xlu0 %244
  %v246 = vsub.f32 %v210, %v245
  %v247 = vmul.f32 %v246, 1.442695
  %v248 = vpow.pop %v247
  %v249 = vsel %vm211, %v248, 0.0
  %250 = vadd.xlane.f32.xlu0 %v249
  %v251 = vpop.xlane.xlu0 %250
  %v252 = vrcp.pop %v251
  %v253 = vmul.f32 %v251, %v252
  %v254 = vsub.f32 1.0, %v253
  %v255 = vmul.f32 %v252, %v254
  %v256 = vadd.f32 %v252, %v255
  %vm257 = vweird.f32 %v251
  %vm258 = vweird.f32 %v252
  %vm259 = vmor %vm257, %vm258
  %v260 = vsel %vm259, %v252, %v256
  %v261 = vand.u32 2147483647, %v251
  %vm262 = vcmp.eq.f32.partialorder %v261, 8.507059e+37
  %v263 = vand.u32 %v251, 2147483648
  %v264 = vor.u32 1.1754944e-38, %v263
  %v265 = vsel %vm262, %v264, %v260
  %v266 = vmul.f32 %v248, %v265
  %267 = vxpose.xlu0.b32.start [1/16] %v243, 128
  %268 = vxpose.xlu0.b32.cont [2/16] 0.0, 128
  %269 = vxpose.xlu0.b32.cont [3/16] 0.0, 128
  %270 = vxpose.xlu0.b32.cont [4/16] 0.0, 128
  %271 = vxpose.xlu0.b32.cont [5/16] 0.0, 128
  %272 = vxpose.xlu0.b32.cont [6/16] 0.0, 128
  %273 = vxpose.xlu0.b32.cont [7/16] 0.0, 128
  %274 = vxpose.xlu0.b32.cont [8/16] 0.0, 128
  %275 = vxpose.xlu0.b32.cont [9/16] 0.0, 128
  %276 = vxpose.xlu0.b32.cont [10/16] 0.0, 128
  %277 = vxpose.xlu0.b32.cont [11/16] 0.0, 128
  %278 = vxpose.xlu0.b32.cont [12/16] 0.0, 128
  %279 = vxpose.xlu0.b32.cont [13/16] 0.0, 128
  %280 = vxpose.xlu0.b32.cont [14/16] 0.0, 128
  %281 = vxpose.xlu0.b32.cont [15/16] 0.0, 128
  %282 = vxpose.xlu0.b32.end [16/16] 0.0, 128
  %v283 = vpop.trf.xlu0
  %v284 = vpop.trf.xlu0
  %v285 = vpop.trf.xlu0
  %v286 = vpop.trf.xlu0
  %v287 = vpop.trf.xlu0
  %v288 = vpop.trf.xlu0
  %v289 = vpop.trf.xlu0
  %v290 = vpop.trf.xlu0
  %v291 = vpop.trf.xlu0
  %v292 = vpop.trf.xlu0
  %v293 = vpop.trf.xlu0
  %v294 = vpop.trf.xlu0
  %v295 = vpop.trf.xlu0
  %v296 = vpop.trf.xlu0
  %v297 = vpop.trf.xlu0
  %v298 = vpop.trf.xlu0
  %v300 = vsel %vm211, %v283, 0
  %302 = vmatpush.msra.mxu0 0.0
  %303 = vmatpush.msra.mxu0 0.0
  %304 = vmatpush.msra.mxu0 0.0
  %305 = vmatpush.msra.mxu0 0.0
  %306 = vmatpush.msra.mxu0 0.0
  %307 = vmatpush.msra.mxu0 0.0
  %308 = vmatpush.msra.mxu0 0.0
  %309 = vmatpush.msra.mxu0 0.0
  %310 = vmatpush.msra.mxu0 0.0
  %311 = vmatpush.msra.mxu0 0.0
  %312 = vmatpush.msra.mxu0 0.0
  %313 = vmatpush.msra.mxu0 0.0
  %314 = vmatpush.msra.mxu0 0.0
  %315 = vmatpush.msra.mxu0 0.0
  %316 = vmatpush.msra.mxu0 0.0
  %317 = vmatpush.msra.mxu0 %v207
  %318 = vmatmul.f32.gmra.mxu0 %v300
  %v319 = vpop.f32.mrf.mxu0
  %v320 = vadd.f32 0.0, %v319
  %321 = vdwg.mxu0
  %323 = vset.pattern.permute.xlu0 0
  %324 = vperm.xlu0 %323, %v43
  %v325 = vpop.permute.xlu0 %324
  %v327 = vmul.f32 %v325, %v320
  %v328 = vadd.f32 %v17, %v327
  %v330 = vsel %vm211, %v243, 0
  %332 = vmatpush.msra.mxu0 0.0
  %333 = vmatpush.msra.mxu0 0.0
  %334 = vmatpush.msra.mxu0 0.0
  %335 = vmatpush.msra.mxu0 0.0
  %336 = vmatpush.msra.mxu0 0.0
  %337 = vmatpush.msra.mxu0 0.0
  %338 = vmatpush.msra.mxu0 0.0
  %339 = vmatpush.msra.mxu0 0.0
  %340 = vmatpush.msra.mxu0 0.0
  %341 = vmatpush.msra.mxu0 0.0
  %342 = vmatpush.msra.mxu0 0.0
  %343 = vmatpush.msra.mxu0 0.0
  %344 = vmatpush.msra.mxu0 0.0
  %345 = vmatpush.msra.mxu0 0.0
  %346 = vmatpush.msra.mxu0 0.0
  %347 = vmatpush.msra.mxu0 %v43
  %348 = vmatmul.f32.gmra.mxu0 %v330
  %v349 = vpop.f32.mrf.mxu0
  %v350 = vadd.f32 0.0, %v349
  %351 = vdwg.mxu0
  %v353 = vsel %vm211, %v266, 0
  %355 = vmatpush.msra.mxu0 0.0
  %356 = vmatpush.msra.mxu0 0.0
  %357 = vmatpush.msra.mxu0 0.0
  %358 = vmatpush.msra.mxu0 0.0
  %359 = vmatpush.msra.mxu0 0.0
  %360 = vmatpush.msra.mxu0 0.0
  %361 = vmatpush.msra.mxu0 0.0
  %362 = vmatpush.msra.mxu0 0.0
  %363 = vmatpush.msra.mxu0 0.0
  %364 = vmatpush.msra.mxu0 0.0
  %365 = vmatpush.msra.mxu0 0.0
  %366 = vmatpush.msra.mxu0 0.0
  %367 = vmatpush.msra.mxu0 0.0
  %368 = vmatpush.msra.mxu0 0.0
  %369 = vmatpush.msra.mxu0 0.0
  %370 = vmatpush.msra.mxu0 %v328
  %371 = vmatmul.f32.gmra.mxu0 %v353
  %v372 = vpop.f32.mrf.mxu0
  %v373 = vadd.f32 0.0, %v372
  %374 = vdwg.mxu0
  %376 = vset.pattern.permute.xlu0 0
  %377 = vperm.xlu0 %376, %v350
  %v378 = vpop.permute.xlu0 %377
  %v380 = vmul.f32 %v378, %v373
  %v381 = vadd.f32 %v204, %v380
  %383 = vrot.lane.b32.xlu0 %v381, 32
  %v384 = vpop.permute.xlu0 %383
  %387 = vrot.lane.b32.xlu0 %v207, 64
  %v388 = vpop.permute.xlu0 %387
  %v390 = vsel %vm45, %v328, %v384
  %vm391 = vcmask 523264
  %v392 = vsel %vm391, %v390, %v388
  %v393 = vsel %vm149, %v145, -inf
  %394 = vmax.xlane.f32.xlu0 %v393
  %v395 = vpop.xlane.xlu0 %394
  %v396 = vsel %vm149, %v146, -inf
  %397 = vmax.xlane.f32.xlu0 %v396
  %v398 = vpop.xlane.xlu0 %397
  %v399 = vsel %vm149, %v147, -inf
  %400 = vmax.xlane.f32.xlu0 %v399
  %v401 = vpop.xlane.xlu0 %400
  %v402 = vsel %vm149, %v148, -inf
  %403 = vmax.xlane.f32.xlu0 %v402
  %v404 = vpop.xlane.xlu0 %403
  %v405 = vmax.f32 %v395, %v398
  %v406 = vmax.f32 %v405, %v401
  %v407 = vmax.f32 %v406, %v404
  %v408 = vsub.f32 %v395, %v407
  %v409 = vmul.f32 %v408, 1.442695
  %v410 = vpow.pop %v409
  %v411 = vsub.f32 %v398, %v407
  %v412 = vmul.f32 %v411, 1.442695
  %v413 = vpow.pop %v412
  %v414 = vsub.f32 %v401, %v407
  %v415 = vmul.f32 %v414, 1.442695
  %v416 = vpow.pop %v415
  %v417 = vsub.f32 %v404, %v407
  %v418 = vmul.f32 %v417, 1.442695
  %v419 = vpow.pop %v418
  %v420 = vadd.f32 %v410, %v413
  %v421 = vadd.f32 %v420, %v416
  %v422 = vadd.f32 %v421, %v419
  %v423 = vrcp.pop %v422
  %v424 = vmul.f32 %v422, %v423
  %v425 = vsub.f32 1.0, %v424
  %v426 = vmul.f32 %v423, %v425
  %v427 = vadd.f32 %v423, %v426
  %vm428 = vweird.f32 %v422
  %vm429 = vweird.f32 %v423
  %vm430 = vmor %vm428, %vm429
  %v431 = vsel %vm430, %v423, %v427
  %v432 = vand.u32 2147483647, %v422
  %vm433 = vcmp.eq.f32.partialorder %v432, 8.507059e+37
  %v434 = vand.u32 %v422, 2147483648
  %v435 = vor.u32 1.1754944e-38, %v434
  %v436 = vsel %vm433, %v435, %v431
  %v437 = vmul.f32 %v410, %v436
  %v438 = vmul.f32 %v413, %v436
  %v439 = vmul.f32 %v416, %v436
  %v440 = vmul.f32 %v419, %v436
  %v441 = vmul.f32 %v437, %v23
  %v442 = vmul.f32 %v438, %v24
  %v443 = vadd.f32 %v441, %v442
  %v444 = vmul.f32 %v439, %v25
  %v445 = vadd.f32 %v443, %v444
  %v446 = vmul.f32 %v440, %v26
  %v447 = vadd.f32 %v445, %v446
  %v448 = vadd.f32 %v31, %v32
  %v449 = vadd.f32 %v448, %v33
  %v450 = vadd.f32 %v449, %v34
  %v451 = vmax.f32 %v145, %v146
  %v452 = vmax.f32 %v451, %v147
  %v453 = vmax.f32 %v452, %v148
  %vm454 = vcmask 130112
  %v455 = vsel %vm454, %v453, -inf
  %v456 = vrot.slane %v455, 4
  %v457 = vmax.f32 %v455, %v456
  %v458 = vrot.slane %v457, 2
  %v459 = vmax.f32 %v457, %v458
  %v460 = vrot.slane %v459, 1
  %v461 = vmax.f32 %v459, %v460
  %v462 = vsub.f32 %v453, %v461
  %v463 = vmul.f32 %v462, 1.442695
  %v464 = vpow.pop %v463
  %v465 = vsel %vm454, %v464, 0.0
  %v466 = vrot.slane %v465, 4
  %v467 = vadd.f32 %v465, %v466
  %v468 = vrot.slane %v467, 2
  %v469 = vadd.f32 %v467, %v468
  %v470 = vrot.slane %v469, 1
  %v471 = vadd.f32 %v469, %v470
  %v472 = vrcp.pop %v471
  %v473 = vmul.f32 %v471, %v472
  %v474 = vsub.f32 1.0, %v473
  %v475 = vmul.f32 %v472, %v474
  %v476 = vadd.f32 %v472, %v475
  %vm477 = vweird.f32 %v471
  %vm478 = vweird.f32 %v472
  %vm479 = vmor %vm477, %vm478
  %v480 = vsel %vm479, %v472, %v476
  %v481 = vand.u32 2147483647, %v471
  %vm482 = vcmp.eq.f32.partialorder %v481, 8.507059e+37
  %v483 = vand.u32 %v471, 2147483648
  %v484 = vor.u32 1.1754944e-38, %v483
  %v485 = vsel %vm482, %v484, %v480
  %v486 = vmul.f32 %v464, %v485
  %487 = vmax.xlane.f32.xlu0 %v455
  %v488 = vpop.xlane.xlu0 %487
  %v489 = vsub.f32 %v453, %v488
  %v490 = vmul.f32 %v489, 1.442695
  %v491 = vpow.pop %v490
  %493 = vrot.lane.b32.xlu0 %v491, 120
  %v494 = vpop.permute.xlu0 %493
  %v496 = vsel %vm211, %v494, 0.0
  %497 = vadd.xlane.f32.xlu0 %v496
  %v498 = vpop.xlane.xlu0 %497
  %v499 = vrcp.pop %v498
  %v500 = vmul.f32 %v498, %v499
  %v501 = vsub.f32 1.0, %v500
  %v502 = vmul.f32 %v499, %v501
  %v503 = vadd.f32 %v499, %v502
  %vm504 = vweird.f32 %v498
  %vm505 = vweird.f32 %v499
  %vm506 = vmor %vm504, %vm505
  %v507 = vsel %vm506, %v499, %v503
  %v508 = vand.u32 2147483647, %v498
  %vm509 = vcmp.eq.f32.partialorder %v508, 8.507059e+37
  %v510 = vand.u32 %v498, 2147483648
  %v511 = vor.u32 1.1754944e-38, %v510
  %v512 = vsel %vm509, %v511, %v507
  %v513 = vmul.f32 %v491, %v512
  %515 = vrot.lane.b32.xlu0 %v486, 120
  %v516 = vpop.permute.xlu0 %515
  %518 = vxpose.xlu0.b32.start [1/16] %v516, 128
  %519 = vxpose.xlu0.b32.cont [2/16] 0.0, 128
  %520 = vxpose.xlu0.b32.cont [3/16] 0.0, 128
  %521 = vxpose.xlu0.b32.cont [4/16] 0.0, 128
  %522 = vxpose.xlu0.b32.cont [5/16] 0.0, 128
  %523 = vxpose.xlu0.b32.cont [6/16] 0.0, 128
  %524 = vxpose.xlu0.b32.cont [7/16] 0.0, 128
  %525 = vxpose.xlu0.b32.cont [8/16] 0.0, 128
  %526 = vxpose.xlu0.b32.cont [9/16] 0.0, 128
  %527 = vxpose.xlu0.b32.cont [10/16] 0.0, 128
  %528 = vxpose.xlu0.b32.cont [11/16] 0.0, 128
  %529 = vxpose.xlu0.b32.cont [12/16] 0.0, 128
  %530 = vxpose.xlu0.b32.cont [13/16] 0.0, 128
  %531 = vxpose.xlu0.b32.cont [14/16] 0.0, 128
  %532 = vxpose.xlu0.b32.cont [15/16] 0.0, 128
  %533 = vxpose.xlu0.b32.end [16/16] 0.0, 128
  %v534 = vpop.trf.xlu0
  %v535 = vpop.trf.xlu0
  %v536 = vpop.trf.xlu0
  %v537 = vpop.trf.xlu0
  %v538 = vpop.trf.xlu0
  %v539 = vpop.trf.xlu0
  %v540 = vpop.trf.xlu0
  %v541 = vpop.trf.xlu0
  %v542 = vpop.trf.xlu0
  %v543 = vpop.trf.xlu0
  %v544 = vpop.trf.xlu0
  %v545 = vpop.trf.xlu0
  %v546 = vpop.trf.xlu0
  %v547 = vpop.trf.xlu0
  %v548 = vpop.trf.xlu0
  %v549 = vpop.trf.xlu0
  %v551 = vsel %vm211, %v534, 0
  %553 = vmatpush.msra.mxu0 0.0
  %554 = vmatpush.msra.mxu0 0.0
  %555 = vmatpush.msra.mxu0 0.0
  %556 = vmatpush.msra.mxu0 0.0
  %557 = vmatpush.msra.mxu0 0.0
  %558 = vmatpush.msra.mxu0 0.0
  %559 = vmatpush.msra.mxu0 0.0
  %560 = vmatpush.msra.mxu0 0.0
  %561 = vmatpush.msra.mxu0 0.0
  %562 = vmatpush.msra.mxu0 0.0
  %563 = vmatpush.msra.mxu0 0.0
  %564 = vmatpush.msra.mxu0 0.0
  %565 = vmatpush.msra.mxu0 0.0
  %566 = vmatpush.msra.mxu0 0.0
  %567 = vmatpush.msra.mxu0 0.0
  %568 = vmatpush.msra.mxu0 %v450
  %569 = vmatmul.f32.gmra.mxu0 %v551
  %v570 = vpop.f32.mrf.mxu0
  %v571 = vadd.f32 0.0, %v570
  %572 = vdwg.mxu0
  %574 = vset.pattern.permute.xlu0 0
  %575 = vperm.xlu0 %574, %v44
  %v576 = vpop.permute.xlu0 %575
  %v578 = vmul.f32 %v576, %v571
  %v579 = vadd.f32 %v18, %v578
  %v580 = vsel %vm211, %v516, 0
  %582 = vmatpush.msra.mxu0 0.0
  %583 = vmatpush.msra.mxu0 0.0
  %584 = vmatpush.msra.mxu0 0.0
  %585 = vmatpush.msra.mxu0 0.0
  %586 = vmatpush.msra.mxu0 0.0
  %587 = vmatpush.msra.mxu0 0.0
  %588 = vmatpush.msra.mxu0 0.0
  %589 = vmatpush.msra.mxu0 0.0
  %590 = vmatpush.msra.mxu0 0.0
  %591 = vmatpush.msra.mxu0 0.0
  %592 = vmatpush.msra.mxu0 0.0
  %593 = vmatpush.msra.mxu0 0.0
  %594 = vmatpush.msra.mxu0 0.0
  %595 = vmatpush.msra.mxu0 0.0
  %596 = vmatpush.msra.mxu0 0.0
  %597 = vmatpush.msra.mxu0 %v44
  %598 = vmatmul.f32.gmra.mxu0 %v580
  %v599 = vpop.f32.mrf.mxu0
  %v600 = vadd.f32 0.0, %v599
  %601 = vdwg.mxu0
  %603 = vrot.lane.b32.xlu0 %v513, 120
  %v604 = vpop.permute.xlu0 %603
  %v605 = vsel %vm211, %v604, 0
  %607 = vmatpush.msra.mxu0 0.0
  %608 = vmatpush.msra.mxu0 0.0
  %609 = vmatpush.msra.mxu0 0.0
  %610 = vmatpush.msra.mxu0 0.0
  %611 = vmatpush.msra.mxu0 0.0
  %612 = vmatpush.msra.mxu0 0.0
  %613 = vmatpush.msra.mxu0 0.0
  %614 = vmatpush.msra.mxu0 0.0
  %615 = vmatpush.msra.mxu0 0.0
  %616 = vmatpush.msra.mxu0 0.0
  %617 = vmatpush.msra.mxu0 0.0
  %618 = vmatpush.msra.mxu0 0.0
  %619 = vmatpush.msra.mxu0 0.0
  %620 = vmatpush.msra.mxu0 0.0
  %621 = vmatpush.msra.mxu0 0.0
  %622 = vmatpush.msra.mxu0 %v579
  %623 = vmatmul.f32.gmra.mxu0 %v605
  %v624 = vpop.f32.mrf.mxu0
  %v625 = vadd.f32 0.0, %v624
  %626 = vdwg.mxu0
  %628 = vset.pattern.permute.xlu0 0
  %629 = vperm.xlu0 %628, %v600
  %v630 = vpop.permute.xlu0 %629
  %v632 = vmul.f32 %v630, %v625
  %v633 = vadd.f32 %v447, %v632
  %635 = vrot.lane.b32.xlu0 %v633, 32
  %v636 = vpop.permute.xlu0 %635
  %639 = vrot.lane.b32.xlu0 %v450, 64
  %v640 = vpop.permute.xlu0 %639
  %v642 = vsel %vm45, %v579, %v636
  %v643 = vsel %vm391, %v642, %v640
  %vm644 = vcmask 785408
  %645 = vst.msk [vmem:[%s4] sm:$0xff] %vm644, %v392
  %646 = vst.msk [vmem:[%s4 + $0x8] sm:$0xff] %vm644, %v643
  // Predicated region
  $region18: #{romhop_forward.1} parent=0 // pred_check
    _
  $region19: #{romhop_forward.1} parent=0 // pred_check_branch
    %648 = sbr.rel (0) target = $region21
  $region20: #{romhop_forward.1} parent=0 // pred_region
    _
  $region21: #{romhop_forward.1} parent=0 // pred_fallthru
    _
  // Predicated region
  $region22: #{romhop_forward.1} parent=0 // pred_check
    _
  $region23: #{romhop_forward.1} parent=0 // pred_check_branch
    %650 = sbr.rel (0) target = $region25
  $region24: #{romhop_forward.1} parent=0 // pred_region
    _
  $region25: #{romhop_forward.1} parent=0 // pred_fallthru
    _

</llo_original>
